<compile_context>
chip_gen: v5e
topology: v5e:2x2
jax: 0.10.0
libtpu: 0.0.40
codegen_flags: <defaults>
</compile_context>

<pallas_src>
import functools

import jax
import jax.numpy as jnp
from jax.experimental import pallas as pl
from jax.experimental.pallas import tpu as pltpu

_LANE = 128
_NEG_BIG = jnp.float32(-1e30)


def _round_up(n, m):
    return ((n + m - 1) // m) * m


def _policy_kernel(x_ref, w_ref, b_ref, out_ref, *, emit_probs):
    # logits = x @ W + b   (bf16 MXU inputs, f32 accumulate)
    x = x_ref[...].astype(jnp.bfloat16)
    logits = jnp.dot(x, w_ref[...], preferred_element_type=jnp.float32) + b_ref[...]
    if emit_probs:
        # numerically-stable softmax over the lane-dense (padded) action axis;
        # padded bias columns are -1e30 -> exp() is exactly 0 there.
        m = jnp.max(logits, axis=-1, keepdims=True)
        e = jnp.exp(logits - m)
        denom = jnp.sum(e, axis=-1, keepdims=True)
        out_ref[...] = (e * pl.reciprocal(denom, approx=True)).astype(out_ref.dtype)
    else:
        out_ref[...] = logits.astype(out_ref.dtype)


def prepare_policy_params(w, b):
    """One-time parameter prep (hoisted out of the per-step path).

    Pads the action axis to a lane-dense multiple of 128, casts W to bf16 and
    sets padded bias columns to -1e30 so padded probabilities are exactly 0.
    """
    hidden, num_actions = w.shape
    na_pad = _round_up(max(num_actions, _LANE), _LANE)
    w_p = jnp.zeros((hidden, na_pad), jnp.bfloat16).at[:, :num_actions].set(
        w.astype(jnp.bfloat16))
    b_p = jnp.full((1, na_pad), _NEG_BIG, jnp.float32).at[0, :num_actions].set(
        b.astype(jnp.float32))
    return w_p, b_p, num_actions


@functools.partial(jax.jit, static_argnames=("emit_probs", "tile"))
def _policy_call(x, w_p, b_p, *, emit_probs, tile=512):
    """Runs the policy head kernel; returns [batch, na_pad] bf16 probs or logits."""
    batch, hidden = x.shape
    na_pad = w_p.shape[1]

    # Batch tile: multiple of 16 (bf16 sublane packing), ragged last block via cdiv.
    tb = min(tile, _round_up(batch, 16))
    grid = (pl.cdiv(batch, tb),)

    # VMEM budget from actual footprint: double-buffered x tile + resident W/b +
    # double-buffered bf16 output tile, with generous headroom; capped well below
    # v7x's 64 MiB per-TC VMEM.
    x_bytes = 2 * tb * hidden * x.dtype.itemsize
    w_bytes = hidden * na_pad * 2
    b_bytes = na_pad * 4
    o_bytes = 2 * tb * na_pad * 2
    vmem_limit = int(min(48 * 1024 * 1024,
                         max(16 * 1024 * 1024,
                             4 * (x_bytes + w_bytes + b_bytes + o_bytes))))

    kernel = functools.partial(_policy_kernel, emit_probs=emit_probs)

    return pl.pallas_call(
        kernel,
        out_shape=jax.ShapeDtypeStruct((batch, na_pad), jnp.bfloat16),
        grid=grid,
        in_specs=[
            pl.BlockSpec((tb, hidden), lambda i: (i, 0)),       # x tile (pipelined)
            pl.BlockSpec((hidden, na_pad), lambda i: (0, 0)),   # W resident in VMEM
            pl.BlockSpec((1, na_pad), lambda i: (0, 0)),        # b resident in VMEM
        ],
        out_specs=pl.BlockSpec((tb, na_pad), lambda i: (i, 0)), # lane-dense output
        compiler_params=pltpu.CompilerParams(
            dimension_semantics=("parallel",),  # batch tiles shard across TCs (v7x)
            vmem_limit_bytes=vmem_limit,
        ),
    )(x, w_p, b_p)


def policy_forward(x, w_p, b_p, num_actions):
    """Compute action distribution (softmax probs) from state representation."""
    probs = _policy_call(x, w_p, b_p, emit_probs=True)
    return probs[:, :num_actions]


def policy_sample(key, x, w_p, b_p, num_actions):
    """Sample an action from the policy distribution.

    TODO(synk): BasePolicy.sample is abstract; this implements the standard
    categorical sample, feeding kernel logits straight to jax.random.categorical
    (no softmax/log pass).  Padded (-1e30) action columns are sliced off first.
    """
    logits = _policy_call(x, w_p, b_p, emit_probs=False)
    return jax.random.categorical(
        key, logits[:, :num_actions].astype(jnp.float32), axis=-1)


if __name__ == "__main__":
    key = jax.random.PRNGKey(0)
    k_x, k_w, k_b, k_s = jax.random.split(key, 4)

    batch, hidden, num_actions = 8, 32, 16
    x = jax.random.normal(k_x, (batch, hidden), dtype=jnp.float32)
    # deterministic synthetic parameters (no checkpoint load)
    w = jax.random.normal(k_w, (hidden, num_actions), dtype=jnp.float32) * 0.1
    b = jax.random.normal(k_b, (num_actions,), dtype=jnp.float32) * 0.01

    # one-time parameter preparation (padding/cast hoisted out of the hot path)
    w_p, b_p, na = prepare_policy_params(w, b)

    probs = policy_forward(x, w_p, b_p, na)
    jax.block_until_ready(probs)
    assert probs.shape == (batch, num_actions)

    # sanity: rows are valid probability distributions
    # (bf16 outputs + approx reciprocal -> loose tolerance)
    probs_f32 = probs.astype(jnp.float32)
    row_sums = jnp.sum(probs_f32, axis=-1)
    assert jnp.allclose(row_sums, jnp.ones_like(row_sums), atol=2e-2), row_sums
    assert bool(jnp.all(probs_f32 >= 0.0))

    # reference check (bf16 matmul + bf16 output -> loose tolerance)
    ref = jax.nn.softmax(x @ w + b[None, :], axis=-1)
    assert jnp.allclose(probs_f32, ref, atol=3e-2), float(
        jnp.max(jnp.abs(probs_f32 - ref)))

    actions = policy_sample(k_s, x, w_p, b_p, na)
    jax.block_until_ready(actions)
    assert actions.shape == (batch,)
    assert bool(jnp.all((actions >= 0) & (actions < num_actions)))

    print("KERNEL_OK")
</pallas_src>

<mosaic_0001>
module attributes {stable_mosaic.version = 11 : i64} {
  func.func @_policy_kernel(%arg0: i32, %arg1: memref<16x32xf32, #tpu.memory_space<vmem>>, %arg2: memref<32x128xbf16, #tpu.memory_space<vmem>>, %arg3: memref<1x128xf32, #tpu.memory_space<vmem>>, %arg4: memref<16x128xbf16, #tpu.memory_space<vmem>>) attributes {dimension_semantics = [#tpu.dimension_semantics<parallel>], iteration_bounds = array<i64: 1>, scalar_prefetch = 0 : i64, scratch_operands = 0 : i64, tpu.core_type = #tpu.core_type<tc>, window_params = [{transform_indices = @transform_0, window_bounds = array<i64: 16, 32>}, {pipeline_mode = #tpu.pipeline_mode<synchronous>, transform_indices = @transform_1, window_bounds = array<i64: 32, 128>}, {pipeline_mode = #tpu.pipeline_mode<synchronous>, transform_indices = @transform_2, window_bounds = array<i64: 1, 128>}, {transform_indices = @transform_3, window_bounds = array<i64: 16, 128>}]} {
    %c0 = arith.constant 0 : index
    %c0_0 = arith.constant 0 : index
    %0 = vector.load %arg1[%c0, %c0_0] : memref<16x32xf32, #tpu.memory_space<vmem>>, vector<16x32xf32>
    %1 = arith.truncf %0 : vector<16x32xf32> to vector<16x32xbf16>
    %c0_1 = arith.constant 0 : index
    %c0_2 = arith.constant 0 : index
    %2 = vector.load %arg2[%c0_1, %c0_2] : memref<32x128xbf16, #tpu.memory_space<vmem>>, vector<32x128xbf16>
    %cst = arith.constant dense<0.000000e+00> : vector<16x128xf32>
    %3 = tpu.matmul %1, %2, %cst {dimension_numbers = #tpu.dot_dimension_numbers<[1], [0], [0], [1], [0, 0, 1, 1], [], []>} : vector<16x32xbf16>, vector<32x128xbf16>, vector<16x128xf32> -> vector<16x128xf32>
    %c0_3 = arith.constant 0 : index
    %c0_4 = arith.constant 0 : index
    %4 = vector.load %arg3[%c0_3, %c0_4] : memref<1x128xf32, #tpu.memory_space<vmem>>, vector<1x128xf32>
    %5 = vector.broadcast %4 : vector<1x128xf32> to vector<16x128xf32>
    %6 = arith.addf %3, %5 : vector<16x128xf32>
    %cst_5 = arith.constant dense<0xFF800000> : vector<16xf32>
    %7 = vector.multi_reduction <maximumf>, %6, %cst_5 [1] : vector<16x128xf32> to vector<16xf32>
    %8 = vector.shape_cast %7 : vector<16xf32> to vector<16x1xf32>
    %9 = vector.broadcast %8 : vector<16x1xf32> to vector<16x128xf32>
    %10 = arith.subf %6, %9 : vector<16x128xf32>
    %11 = math.exp %10 : vector<16x128xf32>
    %cst_6 = arith.constant dense<0.000000e+00> : vector<16xf32>
    %12 = vector.multi_reduction <add>, %11, %cst_6 [1] : vector<16x128xf32> to vector<16xf32>
    %13 = vector.shape_cast %12 : vector<16xf32> to vector<16x1xf32>
    %14 = tpu.reciprocal %13 {approx = true} : vector<16x1xf32> -> vector<16x1xf32>
    %15 = vector.broadcast %14 : vector<16x1xf32> to vector<16x128xf32>
    %16 = arith.mulf %11, %15 : vector<16x128xf32>
    %17 = arith.truncf %16 : vector<16x128xf32> to vector<16x128xbf16>
    %c0_7 = arith.constant 0 : index
    %c0_8 = arith.constant 0 : index
    %18 = vector.load %arg4[%c0_7, %c0_8] : memref<16x128xbf16, #tpu.memory_space<vmem>>, vector<16x128xbf16>
    tpu.vector_store %arg4[%c0_7, %c0_8], %17 {strides = array<i32>} : memref<16x128xbf16, #tpu.memory_space<vmem>>, vector<16x128xbf16>,
    return
  }
  func.func @transform_0(%arg0: i32) -> (i32, i32) {
    %c0_i32 = arith.constant 0 : i32
    %c0_i32_0 = arith.constant 0 : i32
    return %arg0, %c0_i32 : i32, i32
  }
  func.func @transform_1(%arg0: i32) -> (i32, i32) {
    %c0_i32 = arith.constant 0 : i32
    %c0_i32_0 = arith.constant 0 : i32
    %c0_i32_1 = arith.constant 0 : i32
    return %c0_i32, %c0_i32_0 : i32, i32
  }
  func.func @transform_2(%arg0: i32) -> (i32, i32) {
    %c0_i32 = arith.constant 0 : i32
    %c0_i32_0 = arith.constant 0 : i32
    %c0_i32_1 = arith.constant 0 : i32
    return %c0_i32, %c0_i32_0 : i32, i32
  }
  func.func @transform_3(%arg0: i32) -> (i32, i32) {
    %c0_i32 = arith.constant 0 : i32
    %c0_i32_0 = arith.constant 0 : i32
    return %arg0, %c0_i32 : i32, i32
  }
}

</mosaic_0001>

<llo_original>
// kernel: _policy_call.1
$region0: #{_policy_call.1}
  #allocation0 [shape = 'u32[]', space=smem, size = 0x4, offset = 0x4, fixed_abs, tag = 'smem constant byte address 0x4 - core index']
  #allocation1 [shape = 'u32[72,128]{1,0:T(1,128)}', space=vmem, size = 0x9000, scoped, tag = 'internal scratch']
  %s0 = inlined_call_operand.hbm [shape: f32[8,32], index: 0, kind: input, shape index: {}]
  %s1 = inlined_call_operand.hbm [shape: bf16[32,128], index: 1, kind: input, shape index: {}]
  %s2 = inlined_call_operand.vmem [shape: f32[1,128], index: 2, kind: input, shape index: {}]
  %s3 = inlined_call_operand.hbm [shape: bf16[8,128], index: 3, kind: output, shape index: {}]
  %s4 = sld [smem:[#allocation0]]
  $region30: #{_policy_call.1} parent=0
    _
  %s6 = ssub.s32 1, %s4
  %s7 = scalar_select 0, %s6, %s4
  $region1: #{_policy_call.1} parent=0
    #allocation2 [shape = 'u8[8192]{0}', space=vmem, size = 0x2000, scoped, tag = 'input window, operand 0, single buffered']
    #allocation3 [shape = 's32[1]{0}', space=sflag, size = 0x4, scoped, tag = 'scoped memory for _policy_call.1']
    #allocation4 [shape = 's32[1]{0}', space=sflag, size = 0x4, scoped, tag = 'scoped memory for _policy_call.1']
    #allocation5 [shape = 'u8[8192]{0}', space=vmem, size = 0x2000, scoped, tag = 'input window, operand 1, single buffered']
    #allocation6 [shape = 's32[1]{0}', space=sflag, size = 0x4, scoped, tag = 'scoped memory for _policy_call.1']
    #allocation7 [shape = 'u8[4096]{0}', space=vmem, size = 0x1000, scoped, tag = 'output window, operand 0, single buffered']
    %8 = vsyncpa [#allocation3], 0
    %9 = vsyncpa [#allocation6], 0
    %10 = vsyncpa [#allocation4], 0
    // Predicated region
    $region2: #{_policy_call.1} parent=1 // pred_check
      _
    $region3: #{_policy_call.1} parent=1 // pred_check_branch
      %12 = sbr.rel (0) target = $region5
    $region4: #{_policy_call.1} parent=1 // pred_region
      %14 = vsyncadd [#allocation3], 128
      %s15 = sshll.u32 %s0, 4
      %s16 = int_to_ptr.hbm [resolvable:$true] %s15
      %s17 = sshll.u32 [#allocation2], 4
      %s18 = int_to_ptr.vmem [resolvable:$true] %s17
      %23 = dma.hbm_to_vmem [thread:$0]  %s16, 128, %s18, [#allocation3], 128, 128, 8
    $region5: #{_policy_call.1} parent=1 // pred_fallthru
      _
    // Predicated region
    $region6: #{_policy_call.1} parent=1 // pred_check
      _
    $region7: #{_policy_call.1} parent=1 // pred_check_branch
      %25 = sbr.rel (0) target = $region9
    $region8: #{_policy_call.1} parent=1 // pred_region
      %27 = vsyncadd [#allocation6], 0
      %s28 = sshll.u32 %s1, 4
      %s29 = int_to_ptr.hbm [resolvable:$true] %s28
      %s30 = sshll.u32 [#allocation5], 4
      %s31 = int_to_ptr.vmem [resolvable:$true] %s30
      %36 = dma.hbm_to_vmem [thread:$0]  %s29, 256, %s31, [#allocation6], 64, 64, 4
    $region9: #{_policy_call.1} parent=1 // pred_fallthru
      _
    // Predicated region
    $region10: #{_policy_call.1} parent=1 // pred_check
      _
    $region11: #{_policy_call.1} parent=1 // pred_check_branch
      %38 = sbr.rel (0) target = $region13
    $region12: #{_policy_call.1} parent=1 // pred_region
      _
    $region13: #{_policy_call.1} parent=1 // pred_fallthru
      _
    // Predicated region
    $region14: #{_policy_call.1} parent=1 // pred_check
      _
    $region15: #{_policy_call.1} parent=1 // pred_check_branch
      %40 = sbr.rel (0) target = $region17
    $region16: #{_policy_call.1} parent=1 // pred_region
      %42 = dma.done [#allocation3], 256
    $region17: #{_policy_call.1} parent=1 // pred_fallthru
      _
    // Predicated region
    $region18: #{_policy_call.1} parent=1 // pred_check
      _
    $region19: #{_policy_call.1} parent=1 // pred_check_branch
      %44 = sbr.rel (0) target = $region21
    $region20: #{_policy_call.1} parent=1 // pred_region
      %46 = dma.done [#allocation6], 256
    $region21: #{_policy_call.1} parent=1 // pred_fallthru
      _
    %v48 = vld [vmem:[#allocation2] sm:$0xff]
    %v49 = vld [vmem:[#allocation2 + $0x8] sm:$0xff]
    %v50 = vpack.c.bf16 %v49, %v48
    %v51 = vld [vmem:[#allocation5] sm:$0xf]
    %v52 = vld [vmem:[#allocation5 + $0x4] sm:$0xf]
    %v53 = vld [vmem:[#allocation5 + $0x8] sm:$0xf]
    %v54 = vld [vmem:[#allocation5 + $0xc] sm:$0xf]
    %v55 = vld [vmem:[%s2] sm:$0x1]
    %v57 = vperm.slane %v55, 0
    %v63 = vunpack.c.l.b16 %v51
    %v64 = vunpack.c.l.b16 %v52
    %v65 = vunpack.c.l.b16 %v53
    %v66 = vunpack.c.l.b16 %v54
    %v67 = vpack.c.b16 %v64, %v63
    %v68 = vpack.c.b16 %v66, %v65
    %vm71 = vcmask 261120
    %v73 = vsel %vm71, %v50, 0
    %75 = vmatpush.bf16.msra.mxu0 0
    %76 = vmatpush.bf16.msra.mxu0 0
    %77 = vmatpush.bf16.msra.mxu0 0
    %78 = vmatpush.bf16.msra.mxu0 0
    %79 = vmatpush.bf16.msra.mxu0 0
    %80 = vmatpush.bf16.msra.mxu0 0
    %81 = vmatpush.bf16.msra.mxu0 %v68
    %82 = vmatpush.bf16.msra.mxu0 %v67
    %83 = vmatmul.bf16.gmra.mxu0 %v73
    %v84 = vpop.f32.mrf.mxu0
    %v85 = vadd.f32 %v57, %v84
    %v86 = vpop.f32.mrf.mxu0
    %v87 = vadd.f32 %v57, %v86
    %88 = vdwg.mxu0
    %89 = vmax.xlane.f32.xlu0 %v85
    %v90 = vpop.xlane.xlu0 %89
    %91 = vmax.xlane.f32.xlu0 %v87
    %v92 = vpop.xlane.xlu0 %91
    %v93 = vsub.f32 %v85, %v90
    %v94 = vsub.f32 %v87, %v92
    %v95 = vmul.f32 %v93, 1.442695
    %v96 = vpow.pop %v95
    %v97 = vmul.f32 %v94, 1.442695
    %v98 = vpow.pop %v97
    %99 = vadd.xlane.f32.xlu0 %v96
    %v100 = vpop.xlane.xlu0 %99
    %101 = vadd.xlane.f32.xlu0 %v98
    %v102 = vpop.xlane.xlu0 %101
    %v103 = vrcp.pop %v100
    %v104 = vrcp.pop %v102
    %v105 = vmul.f32 %v96, %v103
    %v106 = vmul.f32 %v98, %v104
    %v107 = vpack.c.bf16 %v105, %v105
    %v108 = vpack.c.bf16 %v106, %v106
    %109 = vst [vmem:[#allocation7] sm:$0xf] %v107
    %110 = vst [vmem:[#allocation7 + $0x4] sm:$0xf] %v108
    // Predicated region
    $region22: #{_policy_call.1} parent=1 // pred_check
      _
    $region23: #{_policy_call.1} parent=1 // pred_check_branch
      %112 = sbr.rel (0) target = $region25
    $region24: #{_policy_call.1} parent=1 // pred_region
      %114 = vsyncadd [#allocation4], 64
      %s115 = sshll.u32 [#allocation7], 4
      %s116 = int_to_ptr.vmem [resolvable:$true] %s115
      %s117 = sshll.u32 %s3, 4
      %s118 = int_to_ptr.hbm [resolvable:$true] %s117
      %123 = dma.vmem_to_hbm [thread:$0]  %s116, 64, %s118, [#allocation4], 64, 64, 4
    $region25: #{_policy_call.1} parent=1 // pred_fallthru
      _
    // Predicated region
    $region26: #{_policy_call.1} parent=1 // pred_check
      _
    $region27: #{_policy_call.1} parent=1 // pred_check_branch
      %125 = sbr.rel (0) target = $region29
    $region28: #{_policy_call.1} parent=1 // pred_region
      %127 = dma.done [#allocation4], 128
    $region29: #{_policy_call.1} parent=1 // pred_fallthru
      _
    %128 = vsyncpa [#allocation3], 1
    %129 = vsyncpa [#allocation6], 1
    %130 = vsyncpa [#allocation4], 1

</llo_original>
